<compile_context>
chip_gen: v7x
topology: tpu7x:2x2x1
jax: 0.10.0
libtpu: 0.0.40
codegen_flags: <defaults>
</compile_context>

<pallas_src>
import numpy as np
import jax
import jax.numpy as jnp
from jax.experimental import pallas as pl
from jax.experimental.pallas import tpu as pltpu


def _spectral_conv_kernel(vf_ref, x_ref, w_re_ref, w_im_ref, o_ref):
    vf = vf_ref[0]                 # (2*Mp, Np) bf16: rows [:Mp]=Re(V_fwd), [Mp:]=Im(V_fwd)
    x = x_ref[0]                   # (Np, Cin)  bf16 (real signal)
    Mp = vf.shape[0] // 2          # static

    # Fused forward VFT: one MXU dot, f32 accumulate.
    #   xf[:Mp]  = Re(V_fwd) @ x = Re(x_ft)
    #   xf[Mp:]  = Im(V_fwd) @ x = Im(x_ft)
    xf = jnp.dot(vf, x, preferred_element_type=jnp.float32)     # (2*Mp, Cin)
    xf_re = xf[:Mp]                # (Mp, Cin)   aligned sublane slice
    xf_im = xf[Mp:]                # (Mp, Cin)

    # compl_mul2d (per-mode channel mixing) on the VPU, f32.
    # out_ft[m, o] = sum_i x_ft[m, i] * W1[m, i, o]   (complex)
    w_re = w_re_ref[...]           # (Mp, Cin, Cout)
    w_im = w_im_ref[...]           # (Mp, Cin, Cout)
    of_re = jnp.sum(xf_re[:, :, None] * w_re - xf_im[:, :, None] * w_im, axis=1)  # (Mp, Cout)
    of_im = jnp.sum(xf_re[:, :, None] * w_im + xf_im[:, :, None] * w_re, axis=1)  # (Mp, Cout)

    # Fused inverse VFT, real part only, directly in (Cout, N) layout:
    #   Re(V_inv @ out_ft)^T = [of_re^T | of_im^T] @ [Re(V_fwd); Im(V_fwd)]
    of_cat = jnp.concatenate([of_re, of_im], axis=0)             # (2*Mp, Cout)
    of_t = jnp.transpose(of_cat).astype(jnp.bfloat16)            # (Cout, 2*Mp), tiny
    o_ref[0] = jnp.dot(of_t, vf,
                       preferred_element_type=jnp.float32).astype(o_ref.dtype)  # (Cout, Np)


def spectral_conv2d_fast(x, vf_re, vf_im, w1_re, w1_im):
    """SpectralConv2d_fast forward.

    x:             (B, Cin, N)  f32  — signal on scattered airfoil points.
    vf_re, vf_im:  (B, M, N)    f32  — forward Vandermonde matrix V_fwd (complex as re/im),
                                       M = modes1 * modes2.  V_inv = conj(V_fwd)^T is implicit.
    w1_re, w1_im:  (Cin, Cout, modes1, modes2) f32 — weights1 (complex as re/im).
    Returns:       (B, Cout, N) f32 = Re( V_inv @ (W1 ∘ (V_fwd @ x)) ) per batch.
    """
    B, Cin, N = x.shape
    _, M, _ = vf_re.shape
    cin_w, Cout, m1, m2 = w1_re.shape
    assert cin_w == Cin and m1 * m2 == M
    # NB: the torch module's reshape assumes in_channels == out_channels.

    # Pad N to a lane-dense multiple of 128 and M so 2*Mp is a multiple of 16 (bf16 tiles).
    Np = ((N + 127) // 128) * 128
    Mp = ((M + 7) // 8) * 8

    pad_mn = lambda a: jnp.pad(a, ((0, 0), (0, Mp - M), (0, Np - N)))
    # Stacked [Re(V_fwd); Im(V_fwd)]: (B, 2*Mp, Np), bf16 — the only big streamed operand.
    vf_stack = jnp.concatenate([pad_mn(vf_re), pad_mn(vf_im)], axis=1).astype(jnp.bfloat16)

    # x permuted to (B, Np, Cin); zero-padded points contribute nothing.
    x_perm = jnp.pad(jnp.transpose(x, (0, 2, 1)), ((0, 0), (0, Np - N), (0, 0)))
    x_perm = x_perm.astype(jnp.bfloat16)

    # Weights repacked to (Mp, Cin, Cout), mode m flattened row-major (kx*modes1 + ky),
    # zero-padded modes contribute nothing.  Kept f32 (VPU channel mix).
    def pack_w(w):
        wk = jnp.transpose(w.reshape(Cin, Cout, M), (2, 0, 1))
        return jnp.pad(wk, ((0, Mp - M), (0, 0), (0, 0))).astype(jnp.float32)
    wk_re, wk_im = pack_w(w1_re), pack_w(w1_im)

    out = pl.pallas_call(
        _spectral_conv_kernel,
        out_shape=jax.ShapeDtypeStruct((B, Cout, Np), jnp.float32),
        grid_spec=pltpu.PrefetchScalarGridSpec(
            num_scalar_prefetch=0,
            grid=(B,),
            in_specs=[
                pl.BlockSpec((1, 2 * Mp, Np), lambda b: (b, 0, 0)),   # stacked V_fwd (bf16)
                pl.BlockSpec((1, Np, Cin), lambda b: (b, 0, 0)),      # x (bf16)
                pl.BlockSpec((Mp, Cin, Cout), lambda b: (0, 0, 0)),   # W1 re (grid-invariant)
                pl.BlockSpec((Mp, Cin, Cout), lambda b: (0, 0, 0)),   # W1 im (grid-invariant)
            ],
            out_specs=pl.BlockSpec((1, Cout, Np), lambda b: (b, 0, 0)),
        ),
        # Batch axis parallel -> shards across the 2 TensorCores on v7x (no-op on v5e/v6e).
        # For very large M*N on v7x (64 MiB VMEM), tile N or raise vmem_limit_bytes here.
        compiler_params=pltpu.CompilerParams(dimension_semantics=("parallel",)),
    )(vf_stack, x_perm, wk_re, wk_im)

    return out[:, :, :N]


if __name__ == "__main__":
    key = jax.random.PRNGKey(0)
    B, Cin, Cout = 2, 4, 4
    modes1 = modes2 = 4
    M = modes1 * modes2
    N = 16  # num_pts (scattered airfoil points)

    k1, k2, k3, k4, k5, k6 = jax.random.split(key, 6)

    # Input signal on scattered points: (B, C, N)
    x = jax.random.normal(k1, (B, Cin, N), dtype=jnp.float32)

    # VFT transformer (plain-JAX glue): Vandermonde matrices from point positions.
    x_pos = jax.random.uniform(k2, (B, N), minval=0.0, maxval=1.0)
    y_pos = jax.random.uniform(k3, (B, N), minval=0.0, maxval=1.0)
    x_pos = x_pos / jnp.max(x_pos) * 2.0 * jnp.pi
    y_pos = y_pos / jnp.max(y_pos) * 2.0 * jnp.pi
    kxg, kyg = jnp.meshgrid(jnp.arange(modes1), jnp.arange(modes2), indexing="ij")
    kx = kxg.reshape(-1).astype(jnp.float32)   # (M,), m = kx*modes1 + ky
    ky = kyg.reshape(-1).astype(jnp.float32)
    phase = (kx[None, :, None] * x_pos[:, None, :]
             + ky[None, :, None] * y_pos[:, None, :])          # (B, M, N)
    vf_re = jnp.cos(phase)       # Re exp(-i*phase)
    vf_im = -jnp.sin(phase)      # Im exp(-i*phase)

    # weights1: scale * rand(in, out, m1, m2) complex (deterministic init)
    scale = 1.0 / (Cin * Cout)
    w1_re = scale * jax.random.uniform(k4, (Cin, Cout, modes1, modes2), dtype=jnp.float32)
    w1_im = scale * jax.random.uniform(k5, (Cin, Cout, modes1, modes2), dtype=jnp.float32)
    _ = k6  # TODO(synk): weights2 exists in the module __init__ but is dead in forward.

    out = spectral_conv2d_fast(x, vf_re, vf_im, w1_re, w1_im)
    out = jax.block_until_ready(out)

    # Pure-JAX complex64 reference (mirrors the torch forward exactly), evaluated at the
    # same bf16-quantized V_fwd / x the kernel streams (the bf16 feed is a deliberate
    # bandwidth optimization; accumulation in the kernel is f32).
    vq_re = vf_re.astype(jnp.bfloat16).astype(jnp.float32)
    vq_im = vf_im.astype(jnp.bfloat16).astype(jnp.float32)
    xq = x.astype(jnp.bfloat16).astype(jnp.float32)
    V_fwd = (vq_re + 1j * vq_im).astype(jnp.complex64)          # (B, M, N)
    V_inv = jnp.conj(jnp.transpose(V_fwd, (0, 2, 1)))           # (B, N, M)
    w1 = (w1_re + 1j * w1_im).astype(jnp.complex64)             # (in, out, m1, m2)
    xp = jnp.transpose(xq, (0, 2, 1)).astype(jnp.complex64)     # (B, N, C)
    x_ft = jnp.einsum("bmn,bnc->bmc", V_fwd, xp)                # transformer.forward
    x_ft = jnp.transpose(x_ft, (0, 2, 1)).reshape(B, Cout, modes1, modes2)
    out_ft = jnp.einsum("bixy,ioxy->boxy", x_ft, w1)            # compl_mul2d
    x_ft2 = jnp.transpose(out_ft.reshape(B, Cout, M), (0, 2, 1))
    yref = jnp.einsum("bnm,bmc->bnc", V_inv, x_ft2)             # transformer.inverse
    ref = jnp.real(jnp.transpose(yref, (0, 2, 1)))              # (B, Cout, N)

    assert out.shape == (B, Cout, N)
    np.testing.assert_allclose(np.asarray(out), np.asarray(ref), rtol=3e-2, atol=3e-2)
    print("KERNEL_OK")
</pallas_src>

<mosaic_0001>
module attributes {stable_mosaic.version = 11 : i64} {
  func.func @_spectral_conv_kernel(%arg0: i32, %arg1: memref<1x32x128xbf16, #tpu.memory_space<vmem>>, %arg2: memref<1x128x4xbf16, #tpu.memory_space<vmem>>, %arg3: memref<16x4x4xf32, #tpu.memory_space<vmem>>, %arg4: memref<16x4x4xf32, #tpu.memory_space<vmem>>, %arg5: memref<1x4x128xf32, #tpu.memory_space<vmem>>) attributes {dimension_semantics = [#tpu.dimension_semantics<parallel>], iteration_bounds = array<i64: 2>, scalar_prefetch = 0 : i64, scratch_operands = 0 : i64, tpu.core_type = #tpu.core_type<tc>, window_params = [{transform_indices = @transform_0, window_bounds = array<i64: 1, 32, 128>}, {transform_indices = @transform_1, window_bounds = array<i64: 1, 128, 4>}, {pipeline_mode = #tpu.pipeline_mode<synchronous>, transform_indices = @transform_2, window_bounds = array<i64: 16, 4, 4>}, {pipeline_mode = #tpu.pipeline_mode<synchronous>, transform_indices = @transform_3, window_bounds = array<i64: 16, 4, 4>}, {transform_indices = @transform_4, window_bounds = array<i64: 1, 4, 128>}]} {
    %c0 = arith.constant 0 : index
    %c0_0 = arith.constant 0 : index
    %c0_1 = arith.constant 0 : index
    %0 = vector.load %arg1[%c0, %c0_0, %c0_1] : memref<1x32x128xbf16, #tpu.memory_space<vmem>>, vector<1x32x128xbf16>
    %1 = vector.shape_cast %0 : vector<1x32x128xbf16> to vector<32x128xbf16>
    %c0_2 = arith.constant 0 : index
    %c0_3 = arith.constant 0 : index
    %c0_4 = arith.constant 0 : index
    %2 = vector.load %arg2[%c0_2, %c0_3, %c0_4] : memref<1x128x4xbf16, #tpu.memory_space<vmem>>, vector<1x128x4xbf16>
    %3 = vector.shape_cast %2 : vector<1x128x4xbf16> to vector<128x4xbf16>
    %cst = arith.constant dense<0.000000e+00> : vector<32x4xf32>
    %4 = tpu.matmul %1, %3, %cst {dimension_numbers = #tpu.dot_dimension_numbers<[1], [0], [0], [1], [0, 0, 1, 1], [], []>} : vector<32x128xbf16>, vector<128x4xbf16>, vector<32x4xf32> -> vector<32x4xf32>
    %5 = vector.extract_strided_slice %4 {offsets = [0, 0], sizes = [16, 4], strides = [1, 1]} : vector<32x4xf32> to vector<16x4xf32>
    %6 = vector.extract_strided_slice %4 {offsets = [16, 0], sizes = [16, 4], strides = [1, 1]} : vector<32x4xf32> to vector<16x4xf32>
    %c0_5 = arith.constant 0 : index
    %c0_6 = arith.constant 0 : index
    %c0_7 = arith.constant 0 : index
    %7 = vector.load %arg3[%c0_5, %c0_6, %c0_7] : memref<16x4x4xf32, #tpu.memory_space<vmem>>, vector<16x4x4xf32>
    %c0_8 = arith.constant 0 : index
    %c0_9 = arith.constant 0 : index
    %c0_10 = arith.constant 0 : index
    %8 = vector.load %arg4[%c0_8, %c0_9, %c0_10] : memref<16x4x4xf32, #tpu.memory_space<vmem>>, vector<16x4x4xf32>
    %9 = vector.shape_cast %5 : vector<16x4xf32> to vector<16x4x1xf32>
    %10 = vector.broadcast %9 : vector<16x4x1xf32> to vector<16x4x4xf32>
    %11 = arith.mulf %10, %7 : vector<16x4x4xf32>
    %12 = vector.shape_cast %6 : vector<16x4xf32> to vector<16x4x1xf32>
    %13 = vector.broadcast %12 : vector<16x4x1xf32> to vector<16x4x4xf32>
    %14 = arith.mulf %13, %8 : vector<16x4x4xf32>
    %15 = arith.subf %11, %14 : vector<16x4x4xf32>
    %cst_11 = arith.constant dense<0.000000e+00> : vector<16x4xf32>
    %16 = vector.multi_reduction <add>, %15, %cst_11 [1] : vector<16x4x4xf32> to vector<16x4xf32>
    %17 = vector.shape_cast %5 : vector<16x4xf32> to vector<16x4x1xf32>
    %18 = vector.broadcast %17 : vector<16x4x1xf32> to vector<16x4x4xf32>
    %19 = arith.mulf %18, %8 : vector<16x4x4xf32>
    %20 = vector.shape_cast %6 : vector<16x4xf32> to vector<16x4x1xf32>
    %21 = vector.broadcast %20 : vector<16x4x1xf32> to vector<16x4x4xf32>
    %22 = arith.mulf %21, %7 : vector<16x4x4xf32>
    %23 = arith.addf %19, %22 : vector<16x4x4xf32>
    %cst_12 = arith.constant dense<0.000000e+00> : vector<16x4xf32>
    %24 = vector.multi_reduction <add>, %23, %cst_12 [1] : vector<16x4x4xf32> to vector<16x4xf32>
    %25 = tpu.concatenate %16, %24 in 0 : vector<16x4xf32>, vector<16x4xf32> -> vector<32x4xf32>
    %26 = tpu.transpose %25, [1, 0] : vector<32x4xf32> -> vector<4x32xf32>
    %27 = arith.truncf %26 : vector<4x32xf32> to vector<4x32xbf16>
    %cst_13 = arith.constant dense<0.000000e+00> : vector<4x128xf32>
    %28 = tpu.matmul %27, %1, %cst_13 {dimension_numbers = #tpu.dot_dimension_numbers<[1], [0], [0], [1], [0, 0, 1, 1], [], []>} : vector<4x32xbf16>, vector<32x128xbf16>, vector<4x128xf32> -> vector<4x128xf32>
    %c0_14 = arith.constant 0 : index
    %c0_15 = arith.constant 0 : index
    %c0_16 = arith.constant 0 : index
    %29 = vector.load %arg5[%c0_14, %c0_15, %c0_16] : memref<1x4x128xf32, #tpu.memory_space<vmem>>, vector<1x4x128xf32>
    %30 = vector.shape_cast %29 : vector<1x4x128xf32> to vector<4x128xf32>
    %31 = vector.shape_cast %28 : vector<4x128xf32> to vector<1x4x128xf32>
    tpu.vector_store %arg5[%c0_14, %c0_15, %c0_16], %31 {strides = array<i32>} : memref<1x4x128xf32, #tpu.memory_space<vmem>>, vector<1x4x128xf32>,
    return
  }
  func.func @transform_0(%arg0: i32) -> (i32, i32, i32) {
    %c0_i32 = arith.constant 0 : i32
    %c0_i32_0 = arith.constant 0 : i32
    %c0_i32_1 = arith.constant 0 : i32
    return %arg0, %c0_i32, %c0_i32_0 : i32, i32, i32
  }
  func.func @transform_1(%arg0: i32) -> (i32, i32, i32) {
    %c0_i32 = arith.constant 0 : i32
    %c0_i32_0 = arith.constant 0 : i32
    %c0_i32_1 = arith.constant 0 : i32
    return %arg0, %c0_i32, %c0_i32_0 : i32, i32, i32
  }
  func.func @transform_2(%arg0: i32) -> (i32, i32, i32) {
    %c0_i32 = arith.constant 0 : i32
    %c0_i32_0 = arith.constant 0 : i32
    %c0_i32_1 = arith.constant 0 : i32
    %c0_i32_2 = arith.constant 0 : i32
    return %c0_i32, %c0_i32_0, %c0_i32_1 : i32, i32, i32
  }
  func.func @transform_3(%arg0: i32) -> (i32, i32, i32) {
    %c0_i32 = arith.constant 0 : i32
    %c0_i32_0 = arith.constant 0 : i32
    %c0_i32_1 = arith.constant 0 : i32
    %c0_i32_2 = arith.constant 0 : i32
    return %c0_i32, %c0_i32_0, %c0_i32_1 : i32, i32, i32
  }
  func.func @transform_4(%arg0: i32) -> (i32, i32, i32) {
    %c0_i32 = arith.constant 0 : i32
    %c0_i32_0 = arith.constant 0 : i32
    %c0_i32_1 = arith.constant 0 : i32
    return %arg0, %c0_i32, %c0_i32_0 : i32, i32, i32
  }
}

</mosaic_0001>

<llo_original>
// kernel: tpu_custom_call.1
$region0: #{tpu_custom_call.1}
  #allocation0 [shape = 'u32[]', space=smem, size = 0x4, offset = 0x4, fixed_abs, tag = 'smem constant byte address 0x4 - core index']
  #allocation1 [shape = 'u32[144,128]{1,0:T(1,128)}', space=vmem, size = 0x12000, scoped, tag = 'internal scratch']
  %s0 = inlined_call_operand.vmem [shape: bf16[2,32,128], index: 0, kind: input, shape index: {}]
  %s1 = inlined_call_operand.vmem [shape: bf16[2,128,4], index: 1, kind: input, shape index: {}]
  %s2 = inlined_call_operand.vmem [shape: f32[16,4,4], index: 2, kind: input, shape index: {}]
  %s3 = inlined_call_operand.vmem [shape: f32[16,4,4], index: 3, kind: input, shape index: {}]
  %s4 = inlined_call_operand.hbm [shape: f32[2,4,128], index: 4, kind: output, shape index: {}]
  %s5 = sld [smem:[#allocation0]]
  $region49: #{tpu_custom_call.1} parent=0
    _
  %s7 = ssub.s32 1, %s5
  %s8 = scalar_select 0, %s7, %s5
  $region1: #{tpu_custom_call.1} parent=0
    #allocation2 [shape = 'u8[4096]{0}', space=vmem, size = 0x1000, scoped, tag = 'output window, operand 0']
    #allocation3 [shape = 's32[2]{0}', space=sflag, size = 0x8, scoped, tag = 'scoped memory for tpu_custom_call.1']
    %9 = vsyncpa [#allocation3], 0
    %s10 = scalar_lea.sflag [#allocation3], 1
    %11 = vsyncpa %s10, 0
    loop: start=0, step=1, limit=4
    $region2: #{tpu_custom_call.1} parent=1 // loop_pre_header
      _
    $region3: #{tpu_custom_call.1} parent=1 // loop_header
      %s13 = sphi 0, %s17
      %p14 = scmp.ge.s32.totalorder %s13, 4
      %s23 = sphi 0, %s25
      %s26 = sphi 0, %s23
      %s27 = sphi 0, %s26
      %s43 = sphi 0, %s27
      %s49 = sphi 0, %s51
      %s52 = sphi 0, %s49
      %s53 = sphi 0, %s52
      %s69 = sphi 0, %s53
      %s73 = sphi 0, %s73
      %s75 = sphi 0, %s73
      %s76 = sphi 0, %s75
      %s90 = sphi 0, %s76
      %s94 = sphi 0, %s94
      %s96 = sphi 0, %s94
      %s97 = sphi 0, %s96
      %s111 = sphi 0, %s97
      %s117 = sphi 0, %s119
      %s120 = sphi 0, %s117
      %s121 = sphi 0, %s120
      %s137 = sphi 0, %s121
    $region4: #{tpu_custom_call.1} parent=1 // loop_header_branch
      %16 = sbr.rel (%p14) target = $region8
    $region5: #{tpu_custom_call.1} parent=1 // loop_body
      %s18 = ssub.s32 %s13, 1
      %s19 = ssub.s32 %s13, 2
      %s20 = sadd.s32 %s13, 1
      %s21 = ssub.s32 %s13, %s20
      %p22 = scmp.eq.s32.totalorder %s21, 0
      %s24 = sadd.s32 %s23, 1
      %s25 = scalar_select %p22, %s23, %s24
      %p28 = pneg %p22
      %p29 = scmp.eq.s32.totalorder %s13, 1
      %p30 = por %p28, %p29
      %p31 = scmp.ne.s32.totalorder %s23, %s26
      %p32 = scmp.eq.s32.totalorder %s13, 0
      %p33 = por %p31, %p32
      %p34 = scmp.ne.s32.totalorder %s23, %s26
      %p35 = scmp.eq.s32.totalorder %s18, 1
      %p36 = por %p34, %p35
      %p37 = scmp.ne.s32.totalorder %s26, %s27
      %p38 = scmp.eq.s32.totalorder %s18, 0
      %p39 = por %p37, %p38
      %p40 = scmp.ne.s32.totalorder %s26, %s27
      %p41 = scmp.eq.s32.totalorder %s19, 1
      %p42 = por %p40, %p41
      %p44 = scmp.ne.s32.totalorder %s27, %s43
      %p45 = scmp.eq.s32.totalorder %s19, 0
      %p46 = por %p44, %p45
      %s47 = ssub.s32 %s13, %s20
      %p48 = scmp.eq.s32.totalorder %s47, 0
      %s50 = sadd.s32 %s49, 1
      %s51 = scalar_select %p48, %s49, %s50
      %p54 = pneg %p48
      %p55 = scmp.eq.s32.totalorder %s13, 1
      %p56 = por %p54, %p55
      %p57 = scmp.ne.s32.totalorder %s49, %s52
      %p58 = scmp.eq.s32.totalorder %s13, 0
      %p59 = por %p57, %p58
      %p60 = scmp.ne.s32.totalorder %s49, %s52
      %p61 = scmp.eq.s32.totalorder %s18, 1
      %p62 = por %p60, %p61
      %p63 = scmp.ne.s32.totalorder %s52, %s53
      %p64 = scmp.eq.s32.totalorder %s18, 0
      %p65 = por %p63, %p64
      %p66 = scmp.ne.s32.totalorder %s52, %s53
      %p67 = scmp.eq.s32.totalorder %s19, 1
      %p68 = por %p66, %p67
      %p70 = scmp.ne.s32.totalorder %s53, %s69
      %p71 = scmp.eq.s32.totalorder %s19, 0
      %p72 = por %p70, %p71
      %s74 = sadd.s32 %s73, 1
      %p77 = scmp.eq.s32.totalorder %s13, 1
      %p78 = scmp.ne.s32.totalorder %s73, %s75
      %p79 = scmp.eq.s32.totalorder %s13, 0
      %p80 = por %p78, %p79
      %p81 = scmp.ne.s32.totalorder %s73, %s75
      %p82 = scmp.eq.s32.totalorder %s18, 1
      %p83 = por %p81, %p82
      %p84 = scmp.ne.s32.totalorder %s75, %s76
      %p85 = scmp.eq.s32.totalorder %s18, 0
      %p86 = por %p84, %p85
      %p87 = scmp.ne.s32.totalorder %s75, %s76
      %p88 = scmp.eq.s32.totalorder %s19, 1
      %p89 = por %p87, %p88
      %p91 = scmp.ne.s32.totalorder %s76, %s90
      %p92 = scmp.eq.s32.totalorder %s19, 0
      %p93 = por %p91, %p92
      %s95 = sadd.s32 %s94, 1
      %p98 = scmp.eq.s32.totalorder %s13, 1
      %p99 = scmp.ne.s32.totalorder %s94, %s96
      %p100 = scmp.eq.s32.totalorder %s13, 0
      %p101 = por %p99, %p100
      %p102 = scmp.ne.s32.totalorder %s94, %s96
      %p103 = scmp.eq.s32.totalorder %s18, 1
      %p104 = por %p102, %p103
      %p105 = scmp.ne.s32.totalorder %s96, %s97
      %p106 = scmp.eq.s32.totalorder %s18, 0
      %p107 = por %p105, %p106
      %p108 = scmp.ne.s32.totalorder %s96, %s97
      %p109 = scmp.eq.s32.totalorder %s19, 1
      %p110 = por %p108, %p109
      %p112 = scmp.ne.s32.totalorder %s97, %s111
      %p113 = scmp.eq.s32.totalorder %s19, 0
      %p114 = por %p112, %p113
      %s115 = ssub.s32 %s13, %s20
      %p116 = scmp.eq.s32.totalorder %s115, 0
      %s118 = sadd.s32 %s117, 1
      %s119 = scalar_select %p116, %s117, %s118
      %p122 = pneg %p116
      %p123 = scmp.eq.s32.totalorder %s13, 1
      %p124 = por %p122, %p123
      %p125 = scmp.ne.s32.totalorder %s117, %s120
      %p126 = scmp.eq.s32.totalorder %s13, 0
      %p127 = por %p125, %p126
      %p128 = scmp.ne.s32.totalorder %s117, %s120
      %p129 = scmp.eq.s32.totalorder %s18, 1
      %p130 = por %p128, %p129
      %p131 = scmp.ne.s32.totalorder %s120, %s121
      %p132 = scmp.eq.s32.totalorder %s18, 0
      %p133 = por %p131, %p132
      %p134 = scmp.ne.s32.totalorder %s120, %s121
      %p135 = scmp.eq.s32.totalorder %s19, 1
      %p136 = por %p134, %p135
      %p138 = scmp.ne.s32.totalorder %s121, %s137
      %p139 = scmp.eq.s32.totalorder %s19, 0
      %p140 = por %p138, %p139
      %p141 = scmp.le.s32.totalorder 1, %s13
      %p142 = scmp.lt.s32.totalorder %s13, 3
      %p143 = pnand %p141, %p142
      %p144 = pneg %p143
      // Predicated region
      $region9: #{tpu_custom_call.1} parent=5 // pred_check
        _
      $region10: #{tpu_custom_call.1} parent=5 // pred_check_branch
        %146 = sbr.rel (%p143) target = $region12
      $region11: #{tpu_custom_call.1} parent=5 // pred_region
        %s147 = ssub.s32 %s13, 1
        // Predicated region
        $region13: #{tpu_custom_call.1} parent=11 // pred_check
          %p148 = pneg %p86
        $region14: #{tpu_custom_call.1} parent=11 // pred_check_branch
          %150 = sbr.rel (%p148) target = $region16
        $region15: #{tpu_custom_call.1} parent=11 // pred_region
          _
        $region16: #{tpu_custom_call.1} parent=11 // pred_fallthru
          _
        // Predicated region
        $region17: #{tpu_custom_call.1} parent=11 // pred_check
          %p151 = pneg %p107
        $region18: #{tpu_custom_call.1} parent=11 // pred_check_branch
          %153 = sbr.rel (%p151) target = $region20
        $region19: #{tpu_custom_call.1} parent=11 // pred_region
          _
        $region20: #{tpu_custom_call.1} parent=11 // pred_fallthru
          _
      $region12: #{tpu_custom_call.1} parent=5 // pred_fallthru
        _
      %p154 = scmp.lt.s32.totalorder %s13, 2
      // Predicated region
      $region21: #{tpu_custom_call.1} parent=5 // pred_check
        %p155 = pneg %p154
      $region22: #{tpu_custom_call.1} parent=5 // pred_check_branch
        %157 = sbr.rel (%p155) target = $region24
      $region23: #{tpu_custom_call.1} parent=5 // pred_region
        // Predicated region
        $region25: #{tpu_custom_call.1} parent=23 // pred_check
          %p158 = pneg %p33
        $region26: #{tpu_custom_call.1} parent=23 // pred_check_branch
          %160 = sbr.rel (%p158) target = $region28
        $region27: #{tpu_custom_call.1} parent=23 // pred_region
          %p161 = scmp.lt.s32.totalorder %s13, 1
          %s162 = scalar_select %p161, %s13, 1
          %s163 = smul.addr %s162, 4
          %s164 = smul.addr %s163, 4
          %s165 = scalar_lea.vmem %s0, %s164
        $region28: #{tpu_custom_call.1} parent=23 // pred_fallthru
          _
        // Predicated region
        $region29: #{tpu_custom_call.1} parent=23 // pred_check
          %p166 = pneg %p59
        $region30: #{tpu_custom_call.1} parent=23 // pred_check_branch
          %168 = sbr.rel (%p166) target = $region32
        $region31: #{tpu_custom_call.1} parent=23 // pred_region
          %p169 = scmp.lt.s32.totalorder %s13, 1
          %s170 = scalar_select %p169, %s13, 1
          %s171 = smul.addr %s170, 16
          %s172 = smul.addr %s171, 4
          %s173 = scalar_lea.vmem %s1, %s172
        $region32: #{tpu_custom_call.1} parent=23 // pred_fallthru
          _
      $region24: #{tpu_custom_call.1} parent=5 // pred_fallthru
        _
      %p174 = scmp.le.s32.totalorder 1, %s13
      %p175 = scmp.lt.s32.totalorder %s13, 3
      %p176 = pnand %p174, %p175
      %p177 = pneg %p176
      // Predicated region
      $region33: #{tpu_custom_call.1} parent=5 // pred_check
        _
      $region34: #{tpu_custom_call.1} parent=5 // pred_check_branch
        %179 = sbr.rel (%p176) target = $region36
      $region35: #{tpu_custom_call.1} parent=5 // pred_region
        %s180 = ssub.s32 %s13, 1
        %p181 = scmp.lt.s32.totalorder %s18, 1
        %s182 = scalar_select %p181, %s18, 1
        %s183 = smul.addr %s182, 4
        %s184 = smul.addr %s183, 4
        %s185 = scalar_lea.vmem %s0, %s184
        %p186 = pneg %p39
        %p187 = pneg %p36
        %p188 = scmp.lt.s32.totalorder %s18, 1
        %s189 = scalar_select %p188, %s18, 1
        %s190 = smul.addr %s189, 16
        %s191 = smul.addr %s190, 4
        %s192 = scalar_lea.vmem %s1, %s191
        %p193 = pneg %p65
        %p194 = pneg %p62
        %p195 = pneg %p86
        %p196 = pneg %p83
        %p197 = pneg %p107
        %p198 = pneg %p104
        %p199 = pneg %p133
        %p200 = pneg %p130
        %s201 = sand.u32 %s120, 1
        %s202 = scalar_lea.sflag [#allocation3], %s201
        %s203 = sand.u32 %s120, 1
        %s204 = smul.addr %s203, 4
        %s205 = scalar_lea.vmem [#allocation2], %s204
        %p206 = scmp.lt.s32.totalorder %s18, 1
        %s207 = scalar_select %p206, %s18, 1
        %s208 = smul.addr %s207, 4
        %s209 = smul.addr %s208, 4
        %s210 = scalar_lea.vmem %s0, %s209
        %p211 = scmp.lt.s32.totalorder %s18, 1
        %s212 = scalar_select %p211, %s18, 1
        %s213 = smul.addr %s212, 16
        %s214 = smul.addr %s213, 4
        %s215 = scalar_lea.vmem %s1, %s214
        %v217 = vld [vmem:[%s210] sm:$0xf]
        %v218 = vld [vmem:[%s210 + $0x4] sm:$0xf]
        %v219 = vld [vmem:[%s210 + $0x8] sm:$0xf]
        %v220 = vld [vmem:[%s210 + $0xc] sm:$0xf]
        %v221 = vld [vmem:[%s215] sm:$0xf]
        %v222 = vld [vmem:[%s215 + $0x4] sm:$0xf]
        %v223 = vld [vmem:[%s215 + $0x8] sm:$0xf]
        %v224 = vld [vmem:[%s215 + $0xc] sm:$0xf]
        %v225 = vld [vmem:[%s215 + $0x10] sm:$0xf]
        %v226 = vld [vmem:[%s215 + $0x14] sm:$0xf]
        %v227 = vld [vmem:[%s215 + $0x18] sm:$0xf]
        %v228 = vld [vmem:[%s215 + $0x1c] sm:$0xf]
        %v229 = vld [vmem:[%s215 + $0x20] sm:$0xf]
        %v230 = vld [vmem:[%s215 + $0x24] sm:$0xf]
        %v231 = vld [vmem:[%s215 + $0x28] sm:$0xf]
        %v232 = vld [vmem:[%s215 + $0x2c] sm:$0xf]
        %v233 = vld [vmem:[%s215 + $0x30] sm:$0xf]
        %v234 = vld [vmem:[%s215 + $0x34] sm:$0xf]
        %v235 = vld [vmem:[%s215 + $0x38] sm:$0xf]
        %v236 = vld [vmem:[%s215 + $0x3c] sm:$0xf]
        %v241 = vunpack.c.l.b16 %v217
        %v242 = vunpack.c.l.b16 %v218
        %v243 = vunpack.c.l.b16 %v219
        %v244 = vunpack.c.l.b16 %v220
        %v245 = vpack.c.b16 %v242, %v241
        %v246 = vpack.c.b16 %v244, %v243
        %v265 = vunpack.c.l.b16 %v221
        %v266 = vunpack.c.l.b16 %v222
        %v267 = vunpack.c.l.b16 %v223
        %v268 = vunpack.c.l.b16 %v224
        %v269 = vunpack.c.l.b16 %v225
        %v270 = vunpack.c.l.b16 %v226
        %v271 = vunpack.c.l.b16 %v227
        %v272 = vunpack.c.l.b16 %v228
        %v273 = vunpack.c.l.b16 %v229
        %v274 = vunpack.c.l.b16 %v230
        %v275 = vunpack.c.l.b16 %v231
        %v276 = vunpack.c.l.b16 %v232
        %v277 = vunpack.c.l.b16 %v233
        %v278 = vunpack.c.l.b16 %v234
        %v279 = vunpack.c.l.b16 %v235
        %v280 = vunpack.c.l.b16 %v236
        %v281 = vpack.c.b16 %v266, %v265
        %v282 = vpack.c.b16 %v268, %v267
        %v283 = vpack.c.b16 %v270, %v269
        %v284 = vpack.c.b16 %v272, %v271
        %v285 = vpack.c.b16 %v274, %v273
        %v286 = vpack.c.b16 %v276, %v275
        %v287 = vpack.c.b16 %v278, %v277
        %v288 = vpack.c.b16 %v280, %v279
        %297 = vmatprep.subr.bf16.mxu0 0
        %298 = vmatpush1.bf16.msra.mxu0 %v281
        %299 = vmatprep.subr.bf16.mxu0 0
        %300 = vmatpush1.bf16.msra.mxu0 %v282
        %301 = vmatprep.subr.bf16.mxu0 0
        %302 = vmatpush1.bf16.msra.mxu0 %v283
        %303 = vmatprep.subr.bf16.mxu0 0
        %304 = vmatpush1.bf16.msra.mxu0 %v284
        %305 = vmatprep.subr.bf16.mxu0 0
        %306 = vmatpush1.bf16.msra.mxu0 %v285
        %307 = vmatprep.subr.bf16.mxu0 0
        %308 = vmatpush1.bf16.msra.mxu0 %v286
        %309 = vmatprep.subr.bf16.mxu0 0
        %310 = vmatpush1.bf16.msra.mxu0 %v287
        %311 = vmatprep.subr.bf16.mxu0 0
        %312 = vmatpush1.bf16.msra.mxu0 %v288
        %313 = vmatprep.subr.bf16.mxu0 0
        %314 = vmatpush1.bf16.msra.mxu0 0
        %315 = vmatprep.subr.bf16.mxu0 0
        %316 = vmatpush1.bf16.msra.mxu0 0
        %317 = vmatprep.subr.bf16.mxu0 0
        %318 = vmatpush1.bf16.msra.mxu0 0
        %319 = vmatprep.subr.bf16.mxu0 0
        %320 = vmatpush1.bf16.msra.mxu0 0
        %321 = vmatprep.subr.bf16.mxu0 0
        %322 = vmatpush1.bf16.msra.mxu0 0
        %323 = vmatprep.subr.bf16.mxu0 0
        %324 = vmatpush1.bf16.msra.mxu0 0
        %325 = vmatprep.subr.bf16.mxu0 0
        %326 = vmatpush1.bf16.msra.mxu0 0
        %327 = vmatprep.subr.bf16.mxu0 0
        %328 = vmatpush1.bf16.msra.mxu0 0
        %329 = vmatprep.mubr.bf16.mxu0 0
        %330 = vmatmul.mubr.bf16.gmra.mrb[0].mxu0 %v245
        %v331 = vpop.f32.mrb[0].mxu0
        %v332 = vadd.f32 0.0, %v331
        %v333 = vpop.f32.mrb[0].mxu0
        %v334 = vpop.f32.mrb[0].mxu0
        %v335 = vadd.f32 0.0, %v334
        %v336 = vpop.f32.mrb[0].mxu0
        %337 = vmatprep.mubr.bf16.mxu0 0
        %338 = vmatmul.mubr.bf16.gmra.mrb[0].mxu0 %v246
        %v339 = vpop.f32.mrb[0].mxu0
        %v340 = vadd.f32 0.0, %v339
        %v341 = vpop.f32.mrb[0].mxu0
        %v342 = vpop.f32.mrb[0].mxu0
        %v343 = vadd.f32 0.0, %v342
        %v344 = vpop.f32.mrb[0].mxu0
        %345 = vdwg.mxu0
        %v346 = vld [vmem:[%s2] sm:$0xf]
        %v347 = vld [vmem:[%s2 + $0x4] sm:$0xf]
        %v348 = vld [vmem:[%s2 + $0x8] sm:$0xf]
        %v349 = vld [vmem:[%s2 + $0xc] sm:$0xf]
        %v350 = vld [vmem:[%s2 + $0x10] sm:$0xf]
        %v351 = vld [vmem:[%s2 + $0x14] sm:$0xf]
        %v352 = vld [vmem:[%s2 + $0x18] sm:$0xf]
        %v353 = vld [vmem:[%s2 + $0x1c] sm:$0xf]
        %v354 = vld [vmem:[%s2 + $0x20] sm:$0xf]
        %v355 = vld [vmem:[%s2 + $0x24] sm:$0xf]
        %v356 = vld [vmem:[%s2 + $0x28] sm:$0xf]
        %v357 = vld [vmem:[%s2 + $0x2c] sm:$0xf]
        %v358 = vld [vmem:[%s2 + $0x30] sm:$0xf]
        %v359 = vld [vmem:[%s2 + $0x34] sm:$0xf]
        %v360 = vld [vmem:[%s2 + $0x38] sm:$0xf]
        %v361 = vld [vmem:[%s2 + $0x3c] sm:$0xf]
        %v362 = vld [vmem:[%s3] sm:$0xf]
        %v363 = vld [vmem:[%s3 + $0x4] sm:$0xf]
        %v364 = vld [vmem:[%s3 + $0x8] sm:$0xf]
        %v365 = vld [vmem:[%s3 + $0xc] sm:$0xf]
        %v366 = vld [vmem:[%s3 + $0x10] sm:$0xf]
        %v367 = vld [vmem:[%s3 + $0x14] sm:$0xf]
        %v368 = vld [vmem:[%s3 + $0x18] sm:$0xf]
        %v369 = vld [vmem:[%s3 + $0x1c] sm:$0xf]
        %v370 = vld [vmem:[%s3 + $0x20] sm:$0xf]
        %v371 = vld [vmem:[%s3 + $0x24] sm:$0xf]
        %v372 = vld [vmem:[%s3 + $0x28] sm:$0xf]
        %v373 = vld [vmem:[%s3 + $0x2c] sm:$0xf]
        %v374 = vld [vmem:[%s3 + $0x30] sm:$0xf]
        %v375 = vld [vmem:[%s3 + $0x34] sm:$0xf]
        %v376 = vld [vmem:[%s3 + $0x38] sm:$0xf]
        %v377 = vld [vmem:[%s3 + $0x3c] sm:$0xf]
        %v378 = vlaneseq
        %v379 = vshrl.u32 %v378, 7
        %v380 = vsub.s32 0, %v379
        %v381 = vrot.slane %v332, %v380
        %383 = vbcast.lane.b32.xlu0 %v381, 256
        %v384 = vpop.permute.xlu0 %383
        %v385 = vlaneseq
        %v386 = vshrl.u32 %v385, 7
        %v387 = vsub.s32 1, %v386
        %v388 = vrot.slane %v332, %v387
        %390 = vbcast.lane.b32.xlu0 %v388, 256
        %v391 = vpop.permute.xlu0 %390
        %v392 = vlaneseq
        %v393 = vshrl.u32 %v392, 7
        %v394 = vsub.s32 2, %v393
        %v395 = vrot.slane %v332, %v394
        %397 = vbcast.lane.b32.xlu0 %v395, 256
        %v398 = vpop.permute.xlu0 %397
        %v399 = vlaneseq
        %v400 = vshrl.u32 %v399, 7
        %v401 = vsub.s32 3, %v400
        %v402 = vrot.slane %v332, %v401
        %404 = vbcast.lane.b32.xlu0 %v402, 256
        %v405 = vpop.permute.xlu0 %404
        %v406 = vlaneseq
        %v407 = vshrl.u32 %v406, 7
        %v408 = vsub.s32 4, %v407
        %v409 = vrot.slane %v332, %v408
        %411 = vbcast.lane.b32.xlu0 %v409, 256
        %v412 = vpop.permute.xlu0 %411
        %v413 = vlaneseq
        %v414 = vshrl.u32 %v413, 7
        %v415 = vsub.s32 5, %v414
        %v416 = vrot.slane %v332, %v415
        %418 = vbcast.lane.b32.xlu0 %v416, 256
        %v419 = vpop.permute.xlu0 %418
        %v420 = vlaneseq
        %v421 = vshrl.u32 %v420, 7
        %v422 = vsub.s32 6, %v421
        %v423 = vrot.slane %v332, %v422
        %425 = vbcast.lane.b32.xlu0 %v423, 256
        %v426 = vpop.permute.xlu0 %425
        %v427 = vlaneseq
        %v428 = vshrl.u32 %v427, 7
        %v429 = vsub.s32 7, %v428
        %v430 = vrot.slane %v332, %v429
        %432 = vbcast.lane.b32.xlu0 %v430, 256
        %v433 = vpop.permute.xlu0 %432
        %v434 = vlaneseq
        %v435 = vshrl.u32 %v434, 7
        %v436 = vsub.s32 0, %v435
        %v437 = vrot.slane %v335, %v436
        %439 = vbcast.lane.b32.xlu0 %v437, 256
        %v440 = vpop.permute.xlu0 %439
        %v441 = vlaneseq
        %v442 = vshrl.u32 %v441, 7
        %v443 = vsub.s32 1, %v442
        %v444 = vrot.slane %v335, %v443
        %446 = vbcast.lane.b32.xlu0 %v444, 256
        %v447 = vpop.permute.xlu0 %446
        %v448 = vlaneseq
        %v449 = vshrl.u32 %v448, 7
        %v450 = vsub.s32 2, %v449
        %v451 = vrot.slane %v335, %v450
        %453 = vbcast.lane.b32.xlu0 %v451, 256
        %v454 = vpop.permute.xlu0 %453
        %v455 = vlaneseq
        %v456 = vshrl.u32 %v455, 7
        %v457 = vsub.s32 3, %v456
        %v458 = vrot.slane %v335, %v457
        %460 = vbcast.lane.b32.xlu0 %v458, 256
        %v461 = vpop.permute.xlu0 %460
        %v462 = vlaneseq
        %v463 = vshrl.u32 %v462, 7
        %v464 = vsub.s32 4, %v463
        %v465 = vrot.slane %v335, %v464
        %467 = vbcast.lane.b32.xlu0 %v465, 256
        %v468 = vpop.permute.xlu0 %467
        %v469 = vlaneseq
        %v470 = vshrl.u32 %v469, 7
        %v471 = vsub.s32 5, %v470
        %v472 = vrot.slane %v335, %v471
        %474 = vbcast.lane.b32.xlu0 %v472, 256
        %v475 = vpop.permute.xlu0 %474
        %v476 = vlaneseq
        %v477 = vshrl.u32 %v476, 7
        %v478 = vsub.s32 6, %v477
        %v479 = vrot.slane %v335, %v478
        %481 = vbcast.lane.b32.xlu0 %v479, 256
        %v482 = vpop.permute.xlu0 %481
        %v483 = vlaneseq
        %v484 = vshrl.u32 %v483, 7
        %v485 = vsub.s32 7, %v484
        %v486 = vrot.slane %v335, %v485
        %488 = vbcast.lane.b32.xlu0 %v486, 256
        %v489 = vpop.permute.xlu0 %488
        %v490 = vmul.f32 %v384, %v346
        %v491 = vmul.f32 %v391, %v347
        %v492 = vmul.f32 %v398, %v348
        %v493 = vmul.f32 %v405, %v349
        %v494 = vmul.f32 %v412, %v350
        %v495 = vmul.f32 %v419, %v351
        %v496 = vmul.f32 %v426, %v352
        %v497 = vmul.f32 %v433, %v353
        %v498 = vmul.f32 %v440, %v354
        %v499 = vmul.f32 %v447, %v355
        %v500 = vmul.f32 %v454, %v356
        %v501 = vmul.f32 %v461, %v357
        %v502 = vmul.f32 %v468, %v358
        %v503 = vmul.f32 %v475, %v359
        %v504 = vmul.f32 %v482, %v360
        %v505 = vmul.f32 %v489, %v361
        %v506 = vlaneseq
        %v507 = vshrl.u32 %v506, 7
        %v508 = vsub.s32 0, %v507
        %v509 = vrot.slane %v340, %v508
        %511 = vbcast.lane.b32.xlu0 %v509, 256
        %v512 = vpop.permute.xlu0 %511
        %v513 = vlaneseq
        %v514 = vshrl.u32 %v513, 7
        %v515 = vsub.s32 1, %v514
        %v516 = vrot.slane %v340, %v515
        %518 = vbcast.lane.b32.xlu0 %v516, 256
        %v519 = vpop.permute.xlu0 %518
        %v520 = vlaneseq
        %v521 = vshrl.u32 %v520, 7
        %v522 = vsub.s32 2, %v521
        %v523 = vrot.slane %v340, %v522
        %525 = vbcast.lane.b32.xlu0 %v523, 256
        %v526 = vpop.permute.xlu0 %525
        %v527 = vlaneseq
        %v528 = vshrl.u32 %v527, 7
        %v529 = vsub.s32 3, %v528
        %v530 = vrot.slane %v340, %v529
        %532 = vbcast.lane.b32.xlu0 %v530, 256
        %v533 = vpop.permute.xlu0 %532
        %v534 = vlaneseq
        %v535 = vshrl.u32 %v534, 7
        %v536 = vsub.s32 4, %v535
        %v537 = vrot.slane %v340, %v536
        %539 = vbcast.lane.b32.xlu0 %v537, 256
        %v540 = vpop.permute.xlu0 %539
        %v541 = vlaneseq
        %v542 = vshrl.u32 %v541, 7
        %v543 = vsub.s32 5, %v542
        %v544 = vrot.slane %v340, %v543
        %546 = vbcast.lane.b32.xlu0 %v544, 256
        %v547 = vpop.permute.xlu0 %546
        %v548 = vlaneseq
        %v549 = vshrl.u32 %v548, 7
        %v550 = vsub.s32 6, %v549
        %v551 = vrot.slane %v340, %v550
        %553 = vbcast.lane.b32.xlu0 %v551, 256
        %v554 = vpop.permute.xlu0 %553
        %v555 = vlaneseq
        %v556 = vshrl.u32 %v555, 7
        %v557 = vsub.s32 7, %v556
        %v558 = vrot.slane %v340, %v557
        %560 = vbcast.lane.b32.xlu0 %v558, 256
        %v561 = vpop.permute.xlu0 %560
        %v562 = vlaneseq
        %v563 = vshrl.u32 %v562, 7
        %v564 = vsub.s32 0, %v563
        %v565 = vrot.slane %v343, %v564
        %567 = vbcast.lane.b32.xlu0 %v565, 256
        %v568 = vpop.permute.xlu0 %567
        %v569 = vlaneseq
        %v570 = vshrl.u32 %v569, 7
        %v571 = vsub.s32 1, %v570
        %v572 = vrot.slane %v343, %v571
        %574 = vbcast.lane.b32.xlu0 %v572, 256
        %v575 = vpop.permute.xlu0 %574
        %v576 = vlaneseq
        %v577 = vshrl.u32 %v576, 7
        %v578 = vsub.s32 2, %v577
        %v579 = vrot.slane %v343, %v578
        %581 = vbcast.lane.b32.xlu0 %v579, 256
        %v582 = vpop.permute.xlu0 %581
        %v583 = vlaneseq
        %v584 = vshrl.u32 %v583, 7
        %v585 = vsub.s32 3, %v584
        %v586 = vrot.slane %v343, %v585
        %588 = vbcast.lane.b32.xlu0 %v586, 256
        %v589 = vpop.permute.xlu0 %588
        %v590 = vlaneseq
        %v591 = vshrl.u32 %v590, 7
        %v592 = vsub.s32 4, %v591
        %v593 = vrot.slane %v343, %v592
        %595 = vbcast.lane.b32.xlu0 %v593, 256
        %v596 = vpop.permute.xlu0 %595
        %v597 = vlaneseq
        %v598 = vshrl.u32 %v597, 7
        %v599 = vsub.s32 5, %v598
        %v600 = vrot.slane %v343, %v599
        %602 = vbcast.lane.b32.xlu0 %v600, 256
        %v603 = vpop.permute.xlu0 %602
        %v604 = vlaneseq
        %v605 = vshrl.u32 %v604, 7
        %v606 = vsub.s32 6, %v605
        %v607 = vrot.slane %v343, %v606
        %609 = vbcast.lane.b32.xlu0 %v607, 256
        %v610 = vpop.permute.xlu0 %609
        %v611 = vlaneseq
        %v612 = vshrl.u32 %v611, 7
        %v613 = vsub.s32 7, %v612
        %v614 = vrot.slane %v343, %v613
        %616 = vbcast.lane.b32.xlu0 %v614, 256
        %v617 = vpop.permute.xlu0 %616
        %v618 = vmul.f32 %v512, %v362
        %v619 = vmul.f32 %v519, %v363
        %v620 = vmul.f32 %v526, %v364
        %v621 = vmul.f32 %v533, %v365
        %v622 = vmul.f32 %v540, %v366
        %v623 = vmul.f32 %v547, %v367
        %v624 = vmul.f32 %v554, %v368
        %v625 = vmul.f32 %v561, %v369
        %v626 = vmul.f32 %v568, %v370
        %v627 = vmul.f32 %v575, %v371
        %v628 = vmul.f32 %v582, %v372
        %v629 = vmul.f32 %v589, %v373
        %v630 = vmul.f32 %v596, %v374
        %v631 = vmul.f32 %v603, %v375
        %v632 = vmul.f32 %v610, %v376
        %v633 = vmul.f32 %v617, %v377
        %v634 = vsub.f32 %v490, %v618
        %v635 = vsub.f32 %v491, %v619
        %v636 = vsub.f32 %v492, %v620
        %v637 = vsub.f32 %v493, %v621
        %v638 = vsub.f32 %v494, %v622
        %v639 = vsub.f32 %v495, %v623
        %v640 = vsub.f32 %v496, %v624
        %v641 = vsub.f32 %v497, %v625
        %v642 = vsub.f32 %v498, %v626
        %v643 = vsub.f32 %v499, %v627
        %v644 = vsub.f32 %v500, %v628
        %v645 = vsub.f32 %v501, %v629
        %v646 = vsub.f32 %v502, %v630
        %v647 = vsub.f32 %v503, %v631
        %v648 = vsub.f32 %v504, %v632
        %v649 = vsub.f32 %v505, %v633
        %vm650 = vcmask 27648
        %v651 = vsel %vm650, %v634, 0.0
        %v652 = vrot.slane %v651, 4
        %v653 = vadd.f32 %v651, %v652
        %v654 = vrot.slane %v653, 2
        %v655 = vadd.f32 %v653, %v654
        %v656 = vrot.slane %v655, 1
        %v657 = vadd.f32 %v655, %v656
        %v658 = vsel %vm650, %v635, 0.0
        %v659 = vrot.slane %v658, 4
        %v660 = vadd.f32 %v658, %v659
        %v661 = vrot.slane %v660, 2
        %v662 = vadd.f32 %v660, %v661
        %v663 = vrot.slane %v662, 1
        %v664 = vadd.f32 %v662, %v663
        %v665 = vsel %vm650, %v636, 0.0
        %v666 = vrot.slane %v665, 4
        %v667 = vadd.f32 %v665, %v666
        %v668 = vrot.slane %v667, 2
        %v669 = vadd.f32 %v667, %v668
        %v670 = vrot.slane %v669, 1
        %v671 = vadd.f32 %v669, %v670
        %v672 = vsel %vm650, %v637, 0.0
        %v673 = vrot.slane %v672, 4
        %v674 = vadd.f32 %v672, %v673
        %v675 = vrot.slane %v674, 2
        %v676 = vadd.f32 %v674, %v675
        %v677 = vrot.slane %v676, 1
        %v678 = vadd.f32 %v676, %v677
        %v679 = vsel %vm650, %v638, 0.0
        %v680 = vrot.slane %v679, 4
        %v681 = vadd.f32 %v679, %v680
        %v682 = vrot.slane %v681, 2
        %v683 = vadd.f32 %v681, %v682
        %v684 = vrot.slane %v683, 1
        %v685 = vadd.f32 %v683, %v684
        %v686 = vsel %vm650, %v639, 0.0
        %v687 = vrot.slane %v686, 4
        %v688 = vadd.f32 %v686, %v687
        %v689 = vrot.slane %v688, 2
        %v690 = vadd.f32 %v688, %v689
        %v691 = vrot.slane %v690, 1
        %v692 = vadd.f32 %v690, %v691
        %v693 = vsel %vm650, %v640, 0.0
        %v694 = vrot.slane %v693, 4
        %v695 = vadd.f32 %v693, %v694
        %v696 = vrot.slane %v695, 2
        %v697 = vadd.f32 %v695, %v696
        %v698 = vrot.slane %v697, 1
        %v699 = vadd.f32 %v697, %v698
        %v700 = vsel %vm650, %v641, 0.0
        %v701 = vrot.slane %v700, 4
        %v702 = vadd.f32 %v700, %v701
        %v703 = vrot.slane %v702, 2
        %v704 = vadd.f32 %v702, %v703
        %v705 = vrot.slane %v704, 1
        %v706 = vadd.f32 %v704, %v705
        %v707 = vsel %vm650, %v642, 0.0
        %v708 = vrot.slane %v707, 4
        %v709 = vadd.f32 %v707, %v708
        %v710 = vrot.slane %v709, 2
        %v711 = vadd.f32 %v709, %v710
        %v712 = vrot.slane %v711, 1
        %v713 = vadd.f32 %v711, %v712
        %v714 = vsel %vm650, %v643, 0.0
        %v715 = vrot.slane %v714, 4
        %v716 = vadd.f32 %v714, %v715
        %v717 = vrot.slane %v716, 2
        %v718 = vadd.f32 %v716, %v717
        %v719 = vrot.slane %v718, 1
        %v720 = vadd.f32 %v718, %v719
        %v721 = vsel %vm650, %v644, 0.0
        %v722 = vrot.slane %v721, 4
        %v723 = vadd.f32 %v721, %v722
        %v724 = vrot.slane %v723, 2
        %v725 = vadd.f32 %v723, %v724
        %v726 = vrot.slane %v725, 1
        %v727 = vadd.f32 %v725, %v726
        %v728 = vsel %vm650, %v645, 0.0
        %v729 = vrot.slane %v728, 4
        %v730 = vadd.f32 %v728, %v729
        %v731 = vrot.slane %v730, 2
        %v732 = vadd.f32 %v730, %v731
        %v733 = vrot.slane %v732, 1
        %v734 = vadd.f32 %v732, %v733
        %v735 = vsel %vm650, %v646, 0.0
        %v736 = vrot.slane %v735, 4
        %v737 = vadd.f32 %v735, %v736
        %v738 = vrot.slane %v737, 2
        %v739 = vadd.f32 %v737, %v738
        %v740 = vrot.slane %v739, 1
        %v741 = vadd.f32 %v739, %v740
        %v742 = vsel %vm650, %v647, 0.0
        %v743 = vrot.slane %v742, 4
        %v744 = vadd.f32 %v742, %v743
        %v745 = vrot.slane %v744, 2
        %v746 = vadd.f32 %v744, %v745
        %v747 = vrot.slane %v746, 1
        %v748 = vadd.f32 %v746, %v747
        %v749 = vsel %vm650, %v648, 0.0
        %v750 = vrot.slane %v749, 4
        %v751 = vadd.f32 %v749, %v750
        %v752 = vrot.slane %v751, 2
        %v753 = vadd.f32 %v751, %v752
        %v754 = vrot.slane %v753, 1
        %v755 = vadd.f32 %v753, %v754
        %v756 = vsel %vm650, %v649, 0.0
        %v757 = vrot.slane %v756, 4
        %v758 = vadd.f32 %v756, %v757
        %v759 = vrot.slane %v758, 2
        %v760 = vadd.f32 %v758, %v759
        %v761 = vrot.slane %v760, 1
        %v762 = vadd.f32 %v760, %v761
        %v763 = vmul.f32 %v384, %v362
        %v764 = vmul.f32 %v391, %v363
        %v765 = vmul.f32 %v398, %v364
        %v766 = vmul.f32 %v405, %v365
        %v767 = vmul.f32 %v412, %v366
        %v768 = vmul.f32 %v419, %v367
        %v769 = vmul.f32 %v426, %v368
        %v770 = vmul.f32 %v433, %v369
        %v771 = vmul.f32 %v440, %v370
        %v772 = vmul.f32 %v447, %v371
        %v773 = vmul.f32 %v454, %v372
        %v774 = vmul.f32 %v461, %v373
        %v775 = vmul.f32 %v468, %v374
        %v776 = vmul.f32 %v475, %v375
        %v777 = vmul.f32 %v482, %v376
        %v778 = vmul.f32 %v489, %v377
        %v779 = vmul.f32 %v512, %v346
        %v780 = vmul.f32 %v519, %v347
        %v781 = vmul.f32 %v526, %v348
        %v782 = vmul.f32 %v533, %v349
        %v783 = vmul.f32 %v540, %v350
        %v784 = vmul.f32 %v547, %v351
        %v785 = vmul.f32 %v554, %v352
        %v786 = vmul.f32 %v561, %v353
        %v787 = vmul.f32 %v568, %v354
        %v788 = vmul.f32 %v575, %v355
        %v789 = vmul.f32 %v582, %v356
        %v790 = vmul.f32 %v589, %v357
        %v791 = vmul.f32 %v596, %v358
        %v792 = vmul.f32 %v603, %v359
        %v793 = vmul.f32 %v610, %v360
        %v794 = vmul.f32 %v617, %v361
        %v795 = vadd.f32 %v763, %v779
        %v796 = vadd.f32 %v764, %v780
        %v797 = vadd.f32 %v765, %v781
        %v798 = vadd.f32 %v766, %v782
        %v799 = vadd.f32 %v767, %v783
        %v800 = vadd.f32 %v768, %v784
        %v801 = vadd.f32 %v769, %v785
        %v802 = vadd.f32 %v770, %v786
        %v803 = vadd.f32 %v771, %v787
        %v804 = vadd.f32 %v772, %v788
        %v805 = vadd.f32 %v773, %v789
        %v806 = vadd.f32 %v774, %v790
        %v807 = vadd.f32 %v775, %v791
        %v808 = vadd.f32 %v776, %v792
        %v809 = vadd.f32 %v777, %v793
        %v810 = vadd.f32 %v778, %v794
        %v811 = vsel %vm650, %v795, 0.0
        %v812 = vrot.slane %v811, 4
        %v813 = vadd.f32 %v811, %v812
        %v814 = vrot.slane %v813, 2
        %v815 = vadd.f32 %v813, %v814
        %v816 = vrot.slane %v815, 1
        %v817 = vadd.f32 %v815, %v816
        %v818 = vsel %vm650, %v796, 0.0
        %v819 = vrot.slane %v818, 4
        %v820 = vadd.f32 %v818, %v819
        %v821 = vrot.slane %v820, 2
        %v822 = vadd.f32 %v820, %v821
        %v823 = vrot.slane %v822, 1
        %v824 = vadd.f32 %v822, %v823
        %v825 = vsel %vm650, %v797, 0.0
        %v826 = vrot.slane %v825, 4
        %v827 = vadd.f32 %v825, %v826
        %v828 = vrot.slane %v827, 2
        %v829 = vadd.f32 %v827, %v828
        %v830 = vrot.slane %v829, 1
        %v831 = vadd.f32 %v829, %v830
        %v832 = vsel %vm650, %v798, 0.0
        %v833 = vrot.slane %v832, 4
        %v834 = vadd.f32 %v832, %v833
        %v835 = vrot.slane %v834, 2
        %v836 = vadd.f32 %v834, %v835
        %v837 = vrot.slane %v836, 1
        %v838 = vadd.f32 %v836, %v837
        %v839 = vsel %vm650, %v799, 0.0
        %v840 = vrot.slane %v839, 4
        %v841 = vadd.f32 %v839, %v840
        %v842 = vrot.slane %v841, 2
        %v843 = vadd.f32 %v841, %v842
        %v844 = vrot.slane %v843, 1
        %v845 = vadd.f32 %v843, %v844
        %v846 = vsel %vm650, %v800, 0.0
        %v847 = vrot.slane %v846, 4
        %v848 = vadd.f32 %v846, %v847
        %v849 = vrot.slane %v848, 2
        %v850 = vadd.f32 %v848, %v849
        %v851 = vrot.slane %v850, 1
        %v852 = vadd.f32 %v850, %v851
        %v853 = vsel %vm650, %v801, 0.0
        %v854 = vrot.slane %v853, 4
        %v855 = vadd.f32 %v853, %v854
        %v856 = vrot.slane %v855, 2
        %v857 = vadd.f32 %v855, %v856
        %v858 = vrot.slane %v857, 1
        %v859 = vadd.f32 %v857, %v858
        %v860 = vsel %vm650, %v802, 0.0
        %v861 = vrot.slane %v860, 4
        %v862 = vadd.f32 %v860, %v861
        %v863 = vrot.slane %v862, 2
        %v864 = vadd.f32 %v862, %v863
        %v865 = vrot.slane %v864, 1
        %v866 = vadd.f32 %v864, %v865
        %v867 = vsel %vm650, %v803, 0.0
        %v868 = vrot.slane %v867, 4
        %v869 = vadd.f32 %v867, %v868
        %v870 = vrot.slane %v869, 2
        %v871 = vadd.f32 %v869, %v870
        %v872 = vrot.slane %v871, 1
        %v873 = vadd.f32 %v871, %v872
        %v874 = vsel %vm650, %v804, 0.0
        %v875 = vrot.slane %v874, 4
        %v876 = vadd.f32 %v874, %v875
        %v877 = vrot.slane %v876, 2
        %v878 = vadd.f32 %v876, %v877
        %v879 = vrot.slane %v878, 1
        %v880 = vadd.f32 %v878, %v879
        %v881 = vsel %vm650, %v805, 0.0
        %v882 = vrot.slane %v881, 4
        %v883 = vadd.f32 %v881, %v882
        %v884 = vrot.slane %v883, 2
        %v885 = vadd.f32 %v883, %v884
        %v886 = vrot.slane %v885, 1
        %v887 = vadd.f32 %v885, %v886
        %v888 = vsel %vm650, %v806, 0.0
        %v889 = vrot.slane %v888, 4
        %v890 = vadd.f32 %v888, %v889
        %v891 = vrot.slane %v890, 2
        %v892 = vadd.f32 %v890, %v891
        %v893 = vrot.slane %v892, 1
        %v894 = vadd.f32 %v892, %v893
        %v895 = vsel %vm650, %v807, 0.0
        %v896 = vrot.slane %v895, 4
        %v897 = vadd.f32 %v895, %v896
        %v898 = vrot.slane %v897, 2
        %v899 = vadd.f32 %v897, %v898
        %v900 = vrot.slane %v899, 1
        %v901 = vadd.f32 %v899, %v900
        %v902 = vsel %vm650, %v808, 0.0
        %v903 = vrot.slane %v902, 4
        %v904 = vadd.f32 %v902, %v903
        %v905 = vrot.slane %v904, 2
        %v906 = vadd.f32 %v904, %v905
        %v907 = vrot.slane %v906, 1
        %v908 = vadd.f32 %v906, %v907
        %v909 = vsel %vm650, %v809, 0.0
        %v910 = vrot.slane %v909, 4
        %v911 = vadd.f32 %v909, %v910
        %v912 = vrot.slane %v911, 2
        %v913 = vadd.f32 %v911, %v912
        %v914 = vrot.slane %v913, 1
        %v915 = vadd.f32 %v913, %v914
        %v916 = vsel %vm650, %v810, 0.0
        %v917 = vrot.slane %v916, 4
        %v918 = vadd.f32 %v916, %v917
        %v919 = vrot.slane %v918, 2
        %v920 = vadd.f32 %v918, %v919
        %v921 = vrot.slane %v920, 1
        %v922 = vadd.f32 %v920, %v921
        %vm939 = vcmask 1041409
        %v940 = vsel %vm939, %v664, %v657
        %vm941 = vcmask 1042434
        %v942 = vsel %vm941, %v671, %v940
        %vm943 = vcmask 1043459
        %v944 = vsel %vm943, %v678, %v942
        %vm945 = vcmask 1044484
        %v946 = vsel %vm945, %v685, %v944
        %vm947 = vcmask 1045509
        %v948 = vsel %vm947, %v692, %v946
        %vm949 = vcmask 1046534
        %v950 = vsel %vm949, %v699, %v948
        %vm951 = vcmask 1047559
        %v952 = vsel %vm951, %v706, %v950
        %v953 = vsel %vm939, %v720, %v713
        %v954 = vsel %vm941, %v727, %v953
        %v955 = vsel %vm943, %v734, %v954
        %v956 = vsel %vm945, %v741, %v955
        %v957 = vsel %vm947, %v748, %v956
        %v958 = vsel %vm949, %v755, %v957
        %v959 = vsel %vm951, %v762, %v958
        %v978 = vsel %vm939, %v824, %v817
        %v979 = vsel %vm941, %v831, %v978
        %v980 = vsel %vm943, %v838, %v979
        %v981 = vsel %vm945, %v845, %v980
        %v982 = vsel %vm947, %v852, %v981
        %v983 = vsel %vm949, %v859, %v982
        %v984 = vsel %vm951, %v866, %v983
        %v985 = vsel %vm939, %v880, %v873
        %v986 = vsel %vm941, %v887, %v985
        %v987 = vsel %vm943, %v894, %v986
        %v988 = vsel %vm945, %v901, %v987
        %v989 = vsel %vm947, %v908, %v988
        %v990 = vsel %vm949, %v915, %v989
        %v991 = vsel %vm951, %v922, %v990
        %994 = vxpose.xlu0.b32.start [1/16] %v952, 128
        %995 = vxpose.xlu0.b32.cont [2/16] %v959, 128
        %996 = vxpose.xlu0.b32.cont [3/16] %v984, 128
        %997 = vxpose.xlu0.b32.cont [4/16] %v991, 128
        %998 = vxpose.xlu0.b32.cont [5/16] 0.0, 128
        %999 = vxpose.xlu0.b32.cont [6/16] 0.0, 128
        %1000 = vxpose.xlu0.b32.cont [7/16] 0.0, 128
        %1001 = vxpose.xlu0.b32.cont [8/16] 0.0, 128
        %1002 = vxpose.xlu0.b32.cont [9/16] 0.0, 128
        %1003 = vxpose.xlu0.b32.cont [10/16] 0.0, 128
        %1004 = vxpose.xlu0.b32.cont [11/16] 0.0, 128
        %1005 = vxpose.xlu0.b32.cont [12/16] 0.0, 128
        %1006 = vxpose.xlu0.b32.cont [13/16] 0.0, 128
        %1007 = vxpose.xlu0.b32.cont [14/16] 0.0, 128
        %1008 = vxpose.xlu0.b32.cont [15/16] 0.0, 128
        %1009 = vxpose.xlu0.b32.end [16/16] 0.0, 128
        %v1010 = vpop.trf.xlu0
        %v1011 = vpop.trf.xlu0
        %v1012 = vpop.trf.xlu0
        %v1013 = vpop.trf.xlu0
        %v1014 = vpop.trf.xlu0
        %v1015 = vpop.trf.xlu0
        %v1016 = vpop.trf.xlu0
        %v1017 = vpop.trf.xlu0
        %v1018 = vpop.trf.xlu0
        %v1019 = vpop.trf.xlu0
        %v1020 = vpop.trf.xlu0
        %v1021 = vpop.trf.xlu0
        %v1022 = vpop.trf.xlu0
        %v1023 = vpop.trf.xlu0
        %v1024 = vpop.trf.xlu0
        %v1025 = vpop.trf.xlu0
        %v1026 = vpack.c.bf16 %v1010, %v1010
        %vm1027 = vcmask 261120
        %v1029 = vsel %vm1027, %v1026, 0
        %1031 = vmatprep.subr.bf16.mxu0 0
        %1032 = vmatpush1.bf16.msra.mxu0 %v245
        %1033 = vmatprep.subr.bf16.mxu0 0
        %1034 = vmatpush1.bf16.msra.mxu0 %v246
        %1035 = vmatprep.subr.bf16.mxu0 0
        %1036 = vmatpush1.bf16.msra.mxu0 0
        %1037 = vmatprep.subr.bf16.mxu0 0
        %1038 = vmatpush1.bf16.msra.mxu0 0
        %1039 = vmatprep.subr.bf16.mxu0 0
        %1040 = vmatpush1.bf16.msra.mxu0 0
        %1041 = vmatprep.subr.bf16.mxu0 0
        %1042 = vmatpush1.bf16.msra.mxu0 0
        %1043 = vmatprep.subr.bf16.mxu0 0
        %1044 = vmatpush1.bf16.msra.mxu0 0
        %1045 = vmatprep.subr.bf16.mxu0 0
        %1046 = vmatpush1.bf16.msra.mxu0 0
        %1047 = vmatprep.subr.bf16.mxu0 0
        %1048 = vmatpush1.bf16.msra.mxu0 0
        %1049 = vmatprep.subr.bf16.mxu0 0
        %1050 = vmatpush1.bf16.msra.mxu0 0
        %1051 = vmatprep.subr.bf16.mxu0 0
        %1052 = vmatpush1.bf16.msra.mxu0 0
        %1053 = vmatprep.subr.bf16.mxu0 0
        %1054 = vmatpush1.bf16.msra.mxu0 0
        %1055 = vmatprep.subr.bf16.mxu0 0
        %1056 = vmatpush1.bf16.msra.mxu0 0
        %1057 = vmatprep.subr.bf16.mxu0 0
        %1058 = vmatpush1.bf16.msra.mxu0 0
        %1059 = vmatprep.subr.bf16.mxu0 0
        %1060 = vmatpush1.bf16.msra.mxu0 0
        %1061 = vmatprep.subr.bf16.mxu0 0
        %1062 = vmatpush1.bf16.msra.mxu0 0
        %1063 = vmatprep.mubr.bf16.mxu0 0
        %1064 = vmatmul.mubr.bf16.gmra.mrb[0].mxu0 %v1029
        %v1065 = vpop.f32.mrb[0].mxu0
        %v1066 = vadd.f32 0.0, %v1065
        %v1067 = vpop.f32.mrb[0].mxu0
        %v1068 = vpop.f32.mrb[0].mxu0
        %v1069 = vpop.f32.mrb[0].mxu0
        %1070 = vdwg.mxu0
        %1071 = vst [vmem:[%s205] sm:$0xf] %v1066
        %s1072 = sand.u32 %s120, 1
        %s1073 = scalar_lea.sflag [#allocation3], %s1072
        %s1074 = sand.u32 %s120, 1
        %s1075 = smul.addr %s1074, 4
        %s1076 = scalar_lea.vmem [#allocation2], %s1075
        // Predicated region
        $region37: #{tpu_custom_call.1} parent=35 // pred_check
          %p1077 = pneg %p130
        $region38: #{tpu_custom_call.1} parent=35 // pred_check_branch
          %1079 = sbr.rel (%p1077) target = $region40
        $region39: #{tpu_custom_call.1} parent=35 // pred_region
          %s1081 = ssub.s32 64, 64
          %1082 = vsyncadd %s1073, %s1081
          %s1083 = smul.addr %s18, 64
          %s1084 = scalar_lea.hbm %s4, %s1083
          %s1086 = sshll.u32 %s1076, 4
          %s1087 = int_to_ptr.vmem [resolvable:$true] %s1086
          %1089 = dma.vmem_to_hbm [thread:$0]  %s1087, 64, %s1084, %s1073
        $region40: #{tpu_custom_call.1} parent=35 // pred_fallthru
          _
      $region36: #{tpu_custom_call.1} parent=5 // pred_fallthru
        _
      %p1090 = scmp.le.s32.totalorder 2, %s13
      // Predicated region
      $region41: #{tpu_custom_call.1} parent=5 // pred_check
        %p1091 = pneg %p1090
      $region42: #{tpu_custom_call.1} parent=5 // pred_check_branch
        %1093 = sbr.rel (%p1091) target = $region44
      $region43: #{tpu_custom_call.1} parent=5 // pred_region
        %s1094 = ssub.s32 %s13, 2
        // Predicated region
        $region45: #{tpu_custom_call.1} parent=43 // pred_check
          %p1095 = pneg %p136
        $region46: #{tpu_custom_call.1} parent=43 // pred_check_branch
          %1097 = sbr.rel (%p1095) target = $region48
        $region47: #{tpu_custom_call.1} parent=43 // pred_region
          %s1098 = sand.u32 %s121, 1
          %s1099 = scalar_lea.sflag [#allocation3], %s1098
          %s1100 = sand.u32 %s121, 1
          %s1101 = smul.addr %s1100, 4
          %s1102 = scalar_lea.vmem [#allocation2], %s1101
          %1103 = dma.done %s1099, 64
        $region48: #{tpu_custom_call.1} parent=43 // pred_fallthru
          _
      $region44: #{tpu_custom_call.1} parent=5 // pred_fallthru
        _
    $region6: #{tpu_custom_call.1} parent=1 // loop_footer
      %s17 = sadd.s32 1, %s13
    $region7: #{tpu_custom_call.1} parent=1 // loop_footer_branch
      %12 = sbr.rel target = $region3
    $region8: #{tpu_custom_call.1} parent=1 // loop_exit
      _
    %1104 = vsyncpa [#allocation3], 1
    %s1105 = scalar_lea.sflag [#allocation3], 1
    %1106 = vsyncpa %s1105, 1

</llo_original>
